<compile_context>
chip_gen: v7x
topology: tpu7x:2x2x1
jax: 0.10.0
libtpu: 0.0.40
codegen_flags: <defaults>
</compile_context>

<pallas_src>
import functools

import jax
import jax.numpy as jnp
from jax import lax
from jax.experimental import pallas as pl
from jax.experimental.pallas import tpu as pltpu


def _embedding_gather_kernel(ids_ref, table_ref, out_ref, *,
                             seq_pad, batch, seq_tile, unroll):
    """Pure row gather: out[i, b, :] = table[ids[b, s0 + i], :].

    ids_ref   : (batch * seq_pad,) int32   SMEM (scalar prefetch)
    table_ref : (vocab, w2v)       f32     VMEM, resident across the grid
    out_ref   : (seq_tile, batch, w2v)     one block of the (S, B, D) output
    """
    s0 = pl.program_id(0) * seq_tile

    def body(i, carry):
        pos = s0 + i
        # Static batch loop: gather one table row per batch element, then emit
        # a single (1, batch, D) store for this seq position (sublane-dense
        # when batch >= 8 and D % 128 == 0; correct but masked for toy shapes).
        rows = [table_ref[pl.ds(ids_ref[bb * seq_pad + pos], 1), :]
                for bb in range(batch)]
        val = rows[0] if batch == 1 else jnp.concatenate(rows, axis=0)
        out_ref[pl.ds(i, 1), :, :] = val[None].astype(out_ref.dtype)
        return carry

    lax.fori_loop(0, seq_tile, body, 0, unroll=unroll)


def embedding_forward(ids, emb_fix, emb_v, *, seq_tile=None):
    """ids: (batch, seq) int -> (seq, batch, w2v) float32."""
    b, s = ids.shape
    v, d = emb_fix.shape
    itemsize = jnp.dtype(emb_fix.dtype).itemsize

    # --- Pre-fuse the 3-row learned table into the fixed table (wrapper-side).
    # Token t selects emb_v[relu(t - (v - 3))]:
    #   t < v-2 -> emb_v[0],  t == v-2 -> emb_v[1],  t == v-1 -> emb_v[2]
    # so fused[t] = emb_fix[t] + emb_v[shift(t)] and the kernel is a pure gather.
    fused = emb_fix + emb_v[0][None, :]
    fused = fused.at[v - 2].add(emb_v[1] - emb_v[0])
    fused = fused.at[v - 1].add(emb_v[2] - emb_v[0])

    # --- Validate ids in the wrapper (vectorized, off the kernel's serial
    # scalar chain).  NOTE: torch raises on out-of-range ids; here they are
    # clamped so an OOB id can never become a wild VMEM read inside the kernel.
    ids = jnp.clip(ids.astype(jnp.int32), 0, v - 1)

    # --- Padded sizes for VMEM accounting ((8, 128) vreg tiling).
    d_pad = -(-d // 128) * 128
    v_pad = -(-v // 8) * 8
    b_pad = -(-b // 8) * 8

    try:
        vmem_cap = int(pltpu.get_tpu_info().vmem_capacity_bytes)
    except Exception:   # non-TPU trace / older jax: assume smallest (v7x per-TC)
        vmem_cap = 64 << 20
    budget = vmem_cap - (8 << 20)                       # headroom for compiler scratch

    table_bytes = 2 * v_pad * d_pad * itemsize          # worst case: double-buffered fallback
    def out_tile_bytes(t):                              # double-buffered output block
        return 2 * t * b_pad * d_pad * itemsize

    # --- Pick a seq tile: big enough to amortize ~0.35us/grid-step, small
    # enough that table + double-buffered output tile fit this generation's VMEM.
    tq = seq_tile if seq_tile is not None else min(s, 256)
    tq = max(int(tq), 8)
    while tq > 8 and table_bytes + out_tile_bytes(tq) + (2 << 20) > budget:
        tq = max(8, tq // 2)
    # TODO(synk): when table_bytes alone exceeds the budget (realistic vocabs,
    # especially on v7x's 64 MiB VMEM), keep the table in HBM (memory_space=pl.ANY)
    # and gather rows with a 4-8 deep ring of per-row pltpu.make_async_copy DMAs
    # driven by the prefetched ids.

    num_tiles = pl.cdiv(s, tq)
    s_pad = num_tiles * tq
    if s_pad != s:
        # Pad ids with token 0 so the kernel never reads past the sequence; the
        # extra output rows are masked away by the partial-block writeback.
        ids = jnp.pad(ids, ((0, 0), (0, s_pad - s)))
    ids_flat = ids.reshape(b * s_pad)
    # TODO(synk): for very long sequences, feed ids as a per-tile (b, tq) SMEM
    # block instead of scalar-prefetching the whole array (1D SMEM pads to
    # next_pow2(4*B*S) bytes).

    unroll = True if tq <= 32 else 8

    vmem_limit = int(min(max(table_bytes + out_tile_bytes(tq) + (2 << 20), 32 << 20),
                         budget))

    kernel = functools.partial(_embedding_gather_kernel,
                               seq_pad=s_pad, batch=b, seq_tile=tq, unroll=unroll)
    out_shape = jax.ShapeDtypeStruct((s, b, d), emb_fix.dtype)
    cparams = pltpu.CompilerParams(dimension_semantics=("parallel",),
                                   vmem_limit_bytes=vmem_limit)

    def build(single_buffer_table):
        # Constant index_map -> the table stays VMEM-resident across the grid;
        # Buffered(1) drops the needless second buffer (halves its footprint).
        tbl_kwargs = dict(pipeline_mode=pl.Buffered(1)) if single_buffer_table else {}
        grid_spec = pltpu.PrefetchScalarGridSpec(
            num_scalar_prefetch=1,             # ids -> SMEM
            grid=(num_tiles,),
            in_specs=[pl.BlockSpec((v, d), lambda si, ids_ref: (0, 0), **tbl_kwargs)],
            # Output produced directly in the final (seq, batch, d) layout.
            out_specs=pl.BlockSpec((tq, b, d), lambda si, ids_ref: (si, 0, 0)),
        )
        return pl.pallas_call(kernel, out_shape=out_shape, grid_spec=grid_spec,
                              compiler_params=cparams)

    try:
        return build(single_buffer_table=True)(ids_flat, fused)
    except Exception:
        # jax builds that reject pipeline_mode on the main pallas_call pipeline:
        # fall back to the default double-buffered resident table.
        return build(single_buffer_table=False)(ids_flat, fused)


def reference_forward(ids, emb_fix, emb_v):
    """Plain-JAX reference reproducing the PyTorch forward."""
    vocab = emb_fix.shape[0]
    e1 = emb_fix[ids]                                 # (B, S, D)
    ids_shift = jnp.maximum(ids - (vocab - 3), 0)
    e2 = emb_v[ids_shift]                             # (B, S, D)
    return (e1 + e2).transpose(1, 0, 2)               # (S, B, D)


if __name__ == "__main__":
    # Small, deterministic setup.
    batch, seq = 2, 8
    vocab_size, w2v_size = 64, 32

    key = jax.random.PRNGKey(0)
    k_emb, k_v, k_ids = jax.random.split(key, 3)
    k_ids1, k_ids2 = jax.random.split(k_ids)

    # Pretrained-style fixed embedding table (used verbatim, as with _weight=).
    emb_fix = jax.random.normal(k_emb, (vocab_size, w2v_size), dtype=jnp.float32)

    # Learned 3-row table: N(0,1) init, padding_idx=0 row zeroed.
    emb_v = jax.random.normal(k_v, (3, w2v_size), dtype=jnp.float32)
    emb_v = emb_v.at[0].set(0.0)

    # Token ids in [0, vocab_size); force coverage of the fused rows 0, V-2, V-1.
    ids = jax.random.randint(k_ids1, (batch, seq), 0, vocab_size, dtype=jnp.int32)
    ids = ids.at[0, 0].set(vocab_size - 1).at[0, 1].set(vocab_size - 2).at[1, 0].set(0)

    out = jax.block_until_ready(embedding_forward(ids, emb_fix, emb_v))
    ref = reference_forward(ids, emb_fix, emb_v)
    assert out.shape == (seq, batch, w2v_size), out.shape
    assert jnp.allclose(out, ref, atol=1e-5, rtol=1e-5), "mismatch vs reference"

    # Ragged case: S % seq_tile != 0 exercises wrapper-side id padding, the
    # partial output-block writeback mask, and a multi-step grid that reuses
    # the resident table across steps.
    ids2 = jax.random.randint(k_ids2, (3, 11), 0, vocab_size, dtype=jnp.int32)
    out2 = jax.block_until_ready(embedding_forward(ids2, emb_fix, emb_v, seq_tile=8))
    ref2 = reference_forward(ids2, emb_fix, emb_v)
    assert out2.shape == (11, 3, w2v_size), out2.shape
    assert jnp.allclose(out2, ref2, atol=1e-5, rtol=1e-5), "mismatch vs reference (ragged)"

    print("KERNEL_OK")
</pallas_src>

<mosaic_0001>
module attributes {stable_mosaic.version = 11 : i64} {
  func.func @_embedding_gather_kernel(%arg0: i32, %arg1: memref<16xi32, #tpu.memory_space<smem>>, %arg2: memref<64x32xf32, #tpu.memory_space<vmem>>, %arg3: memref<8x2x32xf32, #tpu.memory_space<vmem>>) attributes {dimension_semantics = [#tpu.dimension_semantics<parallel>], iteration_bounds = array<i64: 1>, scalar_prefetch = 1 : i64, scratch_operands = 0 : i64, tpu.core_type = #tpu.core_type<tc>, window_params = [{pipeline_mode = #tpu.pipeline_mode<synchronous>, transform_indices = @transform_0, window_bounds = array<i64: 64, 32>}, {transform_indices = @transform_1, window_bounds = array<i64: 8, 2, 32>}]} {
    %c8_i32 = arith.constant 8 : i32
    %0 = arith.muli %arg0, %c8_i32 : i32
    %c0_i32 = arith.constant 0 : i32
    %1 = arith.addi %0, %c0_i32 : i32
    %c0_i32_0 = arith.constant 0 : i32
    %2 = arith.addi %c0_i32_0, %1 : i32
    %3 = arith.index_cast %2 : i32 to index
    %4 = memref.load %arg1[%3] : memref<16xi32, #tpu.memory_space<smem>>
    %5 = arith.index_cast %4 : i32 to index
    %c0 = arith.constant 0 : index
    %6 = vector.load %arg2[%5, %c0] : memref<64x32xf32, #tpu.memory_space<vmem>>, vector<1x32xf32>
    %c8_i32_1 = arith.constant 8 : i32
    %7 = arith.addi %c8_i32_1, %1 : i32
    %8 = arith.index_cast %7 : i32 to index
    %9 = memref.load %arg1[%8] : memref<16xi32, #tpu.memory_space<smem>>
    %10 = arith.index_cast %9 : i32 to index
    %c0_2 = arith.constant 0 : index
    %11 = vector.load %arg2[%10, %c0_2] : memref<64x32xf32, #tpu.memory_space<vmem>>, vector<1x32xf32>
    %12 = tpu.concatenate %6, %11 in 0 : vector<1x32xf32>, vector<1x32xf32> -> vector<2x32xf32>
    %13 = vector.shape_cast %12 : vector<2x32xf32> to vector<1x2x32xf32>
    %14 = arith.index_cast %c0_i32 : i32 to index
    %c0_3 = arith.constant 0 : index
    %c0_4 = arith.constant 0 : index
    %15 = vector.load %arg3[%14, %c0_3, %c0_4] : memref<8x2x32xf32, #tpu.memory_space<vmem>>, vector<1x2x32xf32>
    tpu.vector_store %arg3[%14, %c0_3, %c0_4], %13 {strides = array<i32>} : memref<8x2x32xf32, #tpu.memory_space<vmem>>, vector<1x2x32xf32>,
    %c1_i32 = arith.constant 1 : i32
    %16 = arith.addi %0, %c1_i32 : i32
    %c0_i32_5 = arith.constant 0 : i32
    %17 = arith.addi %c0_i32_5, %16 : i32
    %18 = arith.index_cast %17 : i32 to index
    %19 = memref.load %arg1[%18] : memref<16xi32, #tpu.memory_space<smem>>
    %20 = arith.index_cast %19 : i32 to index
    %c0_6 = arith.constant 0 : index
    %21 = vector.load %arg2[%20, %c0_6] : memref<64x32xf32, #tpu.memory_space<vmem>>, vector<1x32xf32>
    %c8_i32_7 = arith.constant 8 : i32
    %22 = arith.addi %c8_i32_7, %16 : i32
    %23 = arith.index_cast %22 : i32 to index
    %24 = memref.load %arg1[%23] : memref<16xi32, #tpu.memory_space<smem>>
    %25 = arith.index_cast %24 : i32 to index
    %c0_8 = arith.constant 0 : index
    %26 = vector.load %arg2[%25, %c0_8] : memref<64x32xf32, #tpu.memory_space<vmem>>, vector<1x32xf32>
    %27 = tpu.concatenate %21, %26 in 0 : vector<1x32xf32>, vector<1x32xf32> -> vector<2x32xf32>
    %28 = vector.shape_cast %27 : vector<2x32xf32> to vector<1x2x32xf32>
    %29 = arith.index_cast %c1_i32 : i32 to index
    %c0_9 = arith.constant 0 : index
    %c0_10 = arith.constant 0 : index
    %30 = vector.load %arg3[%29, %c0_9, %c0_10] : memref<8x2x32xf32, #tpu.memory_space<vmem>>, vector<1x2x32xf32>
    tpu.vector_store %arg3[%29, %c0_9, %c0_10], %28 {strides = array<i32>} : memref<8x2x32xf32, #tpu.memory_space<vmem>>, vector<1x2x32xf32>,
    %c2_i32 = arith.constant 2 : i32
    %31 = arith.addi %0, %c2_i32 : i32
    %c0_i32_11 = arith.constant 0 : i32
    %32 = arith.addi %c0_i32_11, %31 : i32
    %33 = arith.index_cast %32 : i32 to index
    %34 = memref.load %arg1[%33] : memref<16xi32, #tpu.memory_space<smem>>
    %35 = arith.index_cast %34 : i32 to index
    %c0_12 = arith.constant 0 : index
    %36 = vector.load %arg2[%35, %c0_12] : memref<64x32xf32, #tpu.memory_space<vmem>>, vector<1x32xf32>
    %c8_i32_13 = arith.constant 8 : i32
    %37 = arith.addi %c8_i32_13, %31 : i32
    %38 = arith.index_cast %37 : i32 to index
    %39 = memref.load %arg1[%38] : memref<16xi32, #tpu.memory_space<smem>>
    %40 = arith.index_cast %39 : i32 to index
    %c0_14 = arith.constant 0 : index
    %41 = vector.load %arg2[%40, %c0_14] : memref<64x32xf32, #tpu.memory_space<vmem>>, vector<1x32xf32>
    %42 = tpu.concatenate %36, %41 in 0 : vector<1x32xf32>, vector<1x32xf32> -> vector<2x32xf32>
    %43 = vector.shape_cast %42 : vector<2x32xf32> to vector<1x2x32xf32>
    %44 = arith.index_cast %c2_i32 : i32 to index
    %c0_15 = arith.constant 0 : index
    %c0_16 = arith.constant 0 : index
    %45 = vector.load %arg3[%44, %c0_15, %c0_16] : memref<8x2x32xf32, #tpu.memory_space<vmem>>, vector<1x2x32xf32>
    tpu.vector_store %arg3[%44, %c0_15, %c0_16], %43 {strides = array<i32>} : memref<8x2x32xf32, #tpu.memory_space<vmem>>, vector<1x2x32xf32>,
    %c3_i32 = arith.constant 3 : i32
    %46 = arith.addi %0, %c3_i32 : i32
    %c0_i32_17 = arith.constant 0 : i32
    %47 = arith.addi %c0_i32_17, %46 : i32
    %48 = arith.index_cast %47 : i32 to index
    %49 = memref.load %arg1[%48] : memref<16xi32, #tpu.memory_space<smem>>
    %50 = arith.index_cast %49 : i32 to index
    %c0_18 = arith.constant 0 : index
    %51 = vector.load %arg2[%50, %c0_18] : memref<64x32xf32, #tpu.memory_space<vmem>>, vector<1x32xf32>
    %c8_i32_19 = arith.constant 8 : i32
    %52 = arith.addi %c8_i32_19, %46 : i32
    %53 = arith.index_cast %52 : i32 to index
    %54 = memref.load %arg1[%53] : memref<16xi32, #tpu.memory_space<smem>>
    %55 = arith.index_cast %54 : i32 to index
    %c0_20 = arith.constant 0 : index
    %56 = vector.load %arg2[%55, %c0_20] : memref<64x32xf32, #tpu.memory_space<vmem>>, vector<1x32xf32>
    %57 = tpu.concatenate %51, %56 in 0 : vector<1x32xf32>, vector<1x32xf32> -> vector<2x32xf32>
    %58 = vector.shape_cast %57 : vector<2x32xf32> to vector<1x2x32xf32>
    %59 = arith.index_cast %c3_i32 : i32 to index
    %c0_21 = arith.constant 0 : index
    %c0_22 = arith.constant 0 : index
    %60 = vector.load %arg3[%59, %c0_21, %c0_22] : memref<8x2x32xf32, #tpu.memory_space<vmem>>, vector<1x2x32xf32>
    tpu.vector_store %arg3[%59, %c0_21, %c0_22], %58 {strides = array<i32>} : memref<8x2x32xf32, #tpu.memory_space<vmem>>, vector<1x2x32xf32>,
    %c4_i32 = arith.constant 4 : i32
    %61 = arith.addi %0, %c4_i32 : i32
    %c0_i32_23 = arith.constant 0 : i32
    %62 = arith.addi %c0_i32_23, %61 : i32
    %63 = arith.index_cast %62 : i32 to index
    %64 = memref.load %arg1[%63] : memref<16xi32, #tpu.memory_space<smem>>
    %65 = arith.index_cast %64 : i32 to index
    %c0_24 = arith.constant 0 : index
    %66 = vector.load %arg2[%65, %c0_24] : memref<64x32xf32, #tpu.memory_space<vmem>>, vector<1x32xf32>
    %c8_i32_25 = arith.constant 8 : i32
    %67 = arith.addi %c8_i32_25, %61 : i32
    %68 = arith.index_cast %67 : i32 to index
    %69 = memref.load %arg1[%68] : memref<16xi32, #tpu.memory_space<smem>>
    %70 = arith.index_cast %69 : i32 to index
    %c0_26 = arith.constant 0 : index
    %71 = vector.load %arg2[%70, %c0_26] : memref<64x32xf32, #tpu.memory_space<vmem>>, vector<1x32xf32>
    %72 = tpu.concatenate %66, %71 in 0 : vector<1x32xf32>, vector<1x32xf32> -> vector<2x32xf32>
    %73 = vector.shape_cast %72 : vector<2x32xf32> to vector<1x2x32xf32>
    %74 = arith.index_cast %c4_i32 : i32 to index
    %c0_27 = arith.constant 0 : index
    %c0_28 = arith.constant 0 : index
    %75 = vector.load %arg3[%74, %c0_27, %c0_28] : memref<8x2x32xf32, #tpu.memory_space<vmem>>, vector<1x2x32xf32>
    tpu.vector_store %arg3[%74, %c0_27, %c0_28], %73 {strides = array<i32>} : memref<8x2x32xf32, #tpu.memory_space<vmem>>, vector<1x2x32xf32>,
    %c5_i32 = arith.constant 5 : i32
    %76 = arith.addi %0, %c5_i32 : i32
    %c0_i32_29 = arith.constant 0 : i32
    %77 = arith.addi %c0_i32_29, %76 : i32
    %78 = arith.index_cast %77 : i32 to index
    %79 = memref.load %arg1[%78] : memref<16xi32, #tpu.memory_space<smem>>
    %80 = arith.index_cast %79 : i32 to index
    %c0_30 = arith.constant 0 : index
    %81 = vector.load %arg2[%80, %c0_30] : memref<64x32xf32, #tpu.memory_space<vmem>>, vector<1x32xf32>
    %c8_i32_31 = arith.constant 8 : i32
    %82 = arith.addi %c8_i32_31, %76 : i32
    %83 = arith.index_cast %82 : i32 to index
    %84 = memref.load %arg1[%83] : memref<16xi32, #tpu.memory_space<smem>>
    %85 = arith.index_cast %84 : i32 to index
    %c0_32 = arith.constant 0 : index
    %86 = vector.load %arg2[%85, %c0_32] : memref<64x32xf32, #tpu.memory_space<vmem>>, vector<1x32xf32>
    %87 = tpu.concatenate %81, %86 in 0 : vector<1x32xf32>, vector<1x32xf32> -> vector<2x32xf32>
    %88 = vector.shape_cast %87 : vector<2x32xf32> to vector<1x2x32xf32>
    %89 = arith.index_cast %c5_i32 : i32 to index
    %c0_33 = arith.constant 0 : index
    %c0_34 = arith.constant 0 : index
    %90 = vector.load %arg3[%89, %c0_33, %c0_34] : memref<8x2x32xf32, #tpu.memory_space<vmem>>, vector<1x2x32xf32>
    tpu.vector_store %arg3[%89, %c0_33, %c0_34], %88 {strides = array<i32>} : memref<8x2x32xf32, #tpu.memory_space<vmem>>, vector<1x2x32xf32>,
    %c6_i32 = arith.constant 6 : i32
    %91 = arith.addi %0, %c6_i32 : i32
    %c0_i32_35 = arith.constant 0 : i32
    %92 = arith.addi %c0_i32_35, %91 : i32
    %93 = arith.index_cast %92 : i32 to index
    %94 = memref.load %arg1[%93] : memref<16xi32, #tpu.memory_space<smem>>
    %95 = arith.index_cast %94 : i32 to index
    %c0_36 = arith.constant 0 : index
    %96 = vector.load %arg2[%95, %c0_36] : memref<64x32xf32, #tpu.memory_space<vmem>>, vector<1x32xf32>
    %c8_i32_37 = arith.constant 8 : i32
    %97 = arith.addi %c8_i32_37, %91 : i32
    %98 = arith.index_cast %97 : i32 to index
    %99 = memref.load %arg1[%98] : memref<16xi32, #tpu.memory_space<smem>>
    %100 = arith.index_cast %99 : i32 to index
    %c0_38 = arith.constant 0 : index
    %101 = vector.load %arg2[%100, %c0_38] : memref<64x32xf32, #tpu.memory_space<vmem>>, vector<1x32xf32>
    %102 = tpu.concatenate %96, %101 in 0 : vector<1x32xf32>, vector<1x32xf32> -> vector<2x32xf32>
    %103 = vector.shape_cast %102 : vector<2x32xf32> to vector<1x2x32xf32>
    %104 = arith.index_cast %c6_i32 : i32 to index
    %c0_39 = arith.constant 0 : index
    %c0_40 = arith.constant 0 : index
    %105 = vector.load %arg3[%104, %c0_39, %c0_40] : memref<8x2x32xf32, #tpu.memory_space<vmem>>, vector<1x2x32xf32>
    tpu.vector_store %arg3[%104, %c0_39, %c0_40], %103 {strides = array<i32>} : memref<8x2x32xf32, #tpu.memory_space<vmem>>, vector<1x2x32xf32>,
    %c7_i32 = arith.constant 7 : i32
    %106 = arith.addi %0, %c7_i32 : i32
    %c0_i32_41 = arith.constant 0 : i32
    %107 = arith.addi %c0_i32_41, %106 : i32
    %108 = arith.index_cast %107 : i32 to index
    %109 = memref.load %arg1[%108] : memref<16xi32, #tpu.memory_space<smem>>
    %110 = arith.index_cast %109 : i32 to index
    %c0_42 = arith.constant 0 : index
    %111 = vector.load %arg2[%110, %c0_42] : memref<64x32xf32, #tpu.memory_space<vmem>>, vector<1x32xf32>
    %c8_i32_43 = arith.constant 8 : i32
    %112 = arith.addi %c8_i32_43, %106 : i32
    %113 = arith.index_cast %112 : i32 to index
    %114 = memref.load %arg1[%113] : memref<16xi32, #tpu.memory_space<smem>>
    %115 = arith.index_cast %114 : i32 to index
    %c0_44 = arith.constant 0 : index
    %116 = vector.load %arg2[%115, %c0_44] : memref<64x32xf32, #tpu.memory_space<vmem>>, vector<1x32xf32>
    %117 = tpu.concatenate %111, %116 in 0 : vector<1x32xf32>, vector<1x32xf32> -> vector<2x32xf32>
    %118 = vector.shape_cast %117 : vector<2x32xf32> to vector<1x2x32xf32>
    %119 = arith.index_cast %c7_i32 : i32 to index
    %c0_45 = arith.constant 0 : index
    %c0_46 = arith.constant 0 : index
    %120 = vector.load %arg3[%119, %c0_45, %c0_46] : memref<8x2x32xf32, #tpu.memory_space<vmem>>, vector<1x2x32xf32>
    tpu.vector_store %arg3[%119, %c0_45, %c0_46], %118 {strides = array<i32>} : memref<8x2x32xf32, #tpu.memory_space<vmem>>, vector<1x2x32xf32>,
    %c8_i32_47 = arith.constant 8 : i32
    return
  }
  func.func @transform_0(%arg0: i32, %arg1: memref<16xi32, #tpu.memory_space<smem>>) -> (i32, i32) {
    %c0_i32 = arith.constant 0 : i32
    %c0_i32_0 = arith.constant 0 : i32
    %c0_i32_1 = arith.constant 0 : i32
    return %c0_i32, %c0_i32_0 : i32, i32
  }
  func.func @transform_1(%arg0: i32, %arg1: memref<16xi32, #tpu.memory_space<smem>>) -> (i32, i32, i32) {
    %c0_i32 = arith.constant 0 : i32
    %c0_i32_0 = arith.constant 0 : i32
    %c0_i32_1 = arith.constant 0 : i32
    return %arg0, %c0_i32, %c0_i32_0 : i32, i32, i32
  }
}

module attributes {stable_mosaic.version = 11 : i64} {
  func.func @_embedding_gather_kernel(%arg0: i32, %arg1: memref<16xi32, #tpu.memory_space<smem>>, %arg2: memref<64x32xf32, #tpu.memory_space<vmem>>, %arg3: memref<8x2x32xf32, #tpu.memory_space<vmem>>) attributes {dimension_semantics = [#tpu.dimension_semantics<parallel>], iteration_bounds = array<i64: 1>, scalar_prefetch = 1 : i64, scratch_operands = 0 : i64, tpu.core_type = #tpu.core_type<tc>, window_params = [{pipeline_mode = #tpu.pipeline_mode<synchronous>, transform_indices = @transform_0, window_bounds = array<i64: 64, 32>}, {transform_indices = @transform_1, window_bounds = array<i64: 8, 2, 32>}]} {
    %c8_i32 = arith.constant 8 : i32
    %0 = arith.muli %arg0, %c8_i32 : i32
    %c0_i32 = arith.constant 0 : i32
    %1 = arith.addi %0, %c0_i32 : i32
    %c0_i32_0 = arith.constant 0 : i32
    %2 = arith.addi %c0_i32_0, %1 : i32
    %3 = arith.index_cast %2 : i32 to index
    %4 = memref.load %arg1[%3] : memref<16xi32, #tpu.memory_space<smem>>
    %5 = arith.index_cast %4 : i32 to index
    %c0 = arith.constant 0 : index
    %6 = vector.load %arg2[%5, %c0] : memref<64x32xf32, #tpu.memory_space<vmem>>, vector<1x32xf32>
    %c8_i32_1 = arith.constant 8 : i32
    %7 = arith.addi %c8_i32_1, %1 : i32
    %8 = arith.index_cast %7 : i32 to index
    %9 = memref.load %arg1[%8] : memref<16xi32, #tpu.memory_space<smem>>
    %10 = arith.index_cast %9 : i32 to index
    %c0_2 = arith.constant 0 : index
    %11 = vector.load %arg2[%10, %c0_2] : memref<64x32xf32, #tpu.memory_space<vmem>>, vector<1x32xf32>
    %12 = tpu.concatenate %6, %11 in 0 : vector<1x32xf32>, vector<1x32xf32> -> vector<2x32xf32>
    %13 = vector.shape_cast %12 : vector<2x32xf32> to vector<1x2x32xf32>
    %14 = arith.index_cast %c0_i32 : i32 to index
    %c0_3 = arith.constant 0 : index
    %c0_4 = arith.constant 0 : index
    %15 = vector.load %arg3[%14, %c0_3, %c0_4] : memref<8x2x32xf32, #tpu.memory_space<vmem>>, vector<1x2x32xf32>
    tpu.vector_store %arg3[%14, %c0_3, %c0_4], %13 {strides = array<i32>} : memref<8x2x32xf32, #tpu.memory_space<vmem>>, vector<1x2x32xf32>,
    %c1_i32 = arith.constant 1 : i32
    %16 = arith.addi %0, %c1_i32 : i32
    %c0_i32_5 = arith.constant 0 : i32
    %17 = arith.addi %c0_i32_5, %16 : i32
    %18 = arith.index_cast %17 : i32 to index
    %19 = memref.load %arg1[%18] : memref<16xi32, #tpu.memory_space<smem>>
    %20 = arith.index_cast %19 : i32 to index
    %c0_6 = arith.constant 0 : index
    %21 = vector.load %arg2[%20, %c0_6] : memref<64x32xf32, #tpu.memory_space<vmem>>, vector<1x32xf32>
    %c8_i32_7 = arith.constant 8 : i32
    %22 = arith.addi %c8_i32_7, %16 : i32
    %23 = arith.index_cast %22 : i32 to index
    %24 = memref.load %arg1[%23] : memref<16xi32, #tpu.memory_space<smem>>
    %25 = arith.index_cast %24 : i32 to index
    %c0_8 = arith.constant 0 : index
    %26 = vector.load %arg2[%25, %c0_8] : memref<64x32xf32, #tpu.memory_space<vmem>>, vector<1x32xf32>
    %27 = tpu.concatenate %21, %26 in 0 : vector<1x32xf32>, vector<1x32xf32> -> vector<2x32xf32>
    %28 = vector.shape_cast %27 : vector<2x32xf32> to vector<1x2x32xf32>
    %29 = arith.index_cast %c1_i32 : i32 to index
    %c0_9 = arith.constant 0 : index
    %c0_10 = arith.constant 0 : index
    %30 = vector.load %arg3[%29, %c0_9, %c0_10] : memref<8x2x32xf32, #tpu.memory_space<vmem>>, vector<1x2x32xf32>
    tpu.vector_store %arg3[%29, %c0_9, %c0_10], %28 {strides = array<i32>} : memref<8x2x32xf32, #tpu.memory_space<vmem>>, vector<1x2x32xf32>,
    %c2_i32 = arith.constant 2 : i32
    %31 = arith.addi %0, %c2_i32 : i32
    %c0_i32_11 = arith.constant 0 : i32
    %32 = arith.addi %c0_i32_11, %31 : i32
    %33 = arith.index_cast %32 : i32 to index
    %34 = memref.load %arg1[%33] : memref<16xi32, #tpu.memory_space<smem>>
    %35 = arith.index_cast %34 : i32 to index
    %c0_12 = arith.constant 0 : index
    %36 = vector.load %arg2[%35, %c0_12] : memref<64x32xf32, #tpu.memory_space<vmem>>, vector<1x32xf32>
    %c8_i32_13 = arith.constant 8 : i32
    %37 = arith.addi %c8_i32_13, %31 : i32
    %38 = arith.index_cast %37 : i32 to index
    %39 = memref.load %arg1[%38] : memref<16xi32, #tpu.memory_space<smem>>
    %40 = arith.index_cast %39 : i32 to index
    %c0_14 = arith.constant 0 : index
    %41 = vector.load %arg2[%40, %c0_14] : memref<64x32xf32, #tpu.memory_space<vmem>>, vector<1x32xf32>
    %42 = tpu.concatenate %36, %41 in 0 : vector<1x32xf32>, vector<1x32xf32> -> vector<2x32xf32>
    %43 = vector.shape_cast %42 : vector<2x32xf32> to vector<1x2x32xf32>
    %44 = arith.index_cast %c2_i32 : i32 to index
    %c0_15 = arith.constant 0 : index
    %c0_16 = arith.constant 0 : index
    %45 = vector.load %arg3[%44, %c0_15, %c0_16] : memref<8x2x32xf32, #tpu.memory_space<vmem>>, vector<1x2x32xf32>
    tpu.vector_store %arg3[%44, %c0_15, %c0_16], %43 {strides = array<i32>} : memref<8x2x32xf32, #tpu.memory_space<vmem>>, vector<1x2x32xf32>,
    %c3_i32 = arith.constant 3 : i32
    %46 = arith.addi %0, %c3_i32 : i32
    %c0_i32_17 = arith.constant 0 : i32
    %47 = arith.addi %c0_i32_17, %46 : i32
    %48 = arith.index_cast %47 : i32 to index
    %49 = memref.load %arg1[%48] : memref<16xi32, #tpu.memory_space<smem>>
    %50 = arith.index_cast %49 : i32 to index
    %c0_18 = arith.constant 0 : index
    %51 = vector.load %arg2[%50, %c0_18] : memref<64x32xf32, #tpu.memory_space<vmem>>, vector<1x32xf32>
    %c8_i32_19 = arith.constant 8 : i32
    %52 = arith.addi %c8_i32_19, %46 : i32
    %53 = arith.index_cast %52 : i32 to index
    %54 = memref.load %arg1[%53] : memref<16xi32, #tpu.memory_space<smem>>
    %55 = arith.index_cast %54 : i32 to index
    %c0_20 = arith.constant 0 : index
    %56 = vector.load %arg2[%55, %c0_20] : memref<64x32xf32, #tpu.memory_space<vmem>>, vector<1x32xf32>
    %57 = tpu.concatenate %51, %56 in 0 : vector<1x32xf32>, vector<1x32xf32> -> vector<2x32xf32>
    %58 = vector.shape_cast %57 : vector<2x32xf32> to vector<1x2x32xf32>
    %59 = arith.index_cast %c3_i32 : i32 to index
    %c0_21 = arith.constant 0 : index
    %c0_22 = arith.constant 0 : index
    %60 = vector.load %arg3[%59, %c0_21, %c0_22] : memref<8x2x32xf32, #tpu.memory_space<vmem>>, vector<1x2x32xf32>
    tpu.vector_store %arg3[%59, %c0_21, %c0_22], %58 {strides = array<i32>} : memref<8x2x32xf32, #tpu.memory_space<vmem>>, vector<1x2x32xf32>,
    %c4_i32 = arith.constant 4 : i32
    %61 = arith.addi %0, %c4_i32 : i32
    %c0_i32_23 = arith.constant 0 : i32
    %62 = arith.addi %c0_i32_23, %61 : i32
    %63 = arith.index_cast %62 : i32 to index
    %64 = memref.load %arg1[%63] : memref<16xi32, #tpu.memory_space<smem>>
    %65 = arith.index_cast %64 : i32 to index
    %c0_24 = arith.constant 0 : index
    %66 = vector.load %arg2[%65, %c0_24] : memref<64x32xf32, #tpu.memory_space<vmem>>, vector<1x32xf32>
    %c8_i32_25 = arith.constant 8 : i32
    %67 = arith.addi %c8_i32_25, %61 : i32
    %68 = arith.index_cast %67 : i32 to index
    %69 = memref.load %arg1[%68] : memref<16xi32, #tpu.memory_space<smem>>
    %70 = arith.index_cast %69 : i32 to index
    %c0_26 = arith.constant 0 : index
    %71 = vector.load %arg2[%70, %c0_26] : memref<64x32xf32, #tpu.memory_space<vmem>>, vector<1x32xf32>
    %72 = tpu.concatenate %66, %71 in 0 : vector<1x32xf32>, vector<1x32xf32> -> vector<2x32xf32>
    %73 = vector.shape_cast %72 : vector<2x32xf32> to vector<1x2x32xf32>
    %74 = arith.index_cast %c4_i32 : i32 to index
    %c0_27 = arith.constant 0 : index
    %c0_28 = arith.constant 0 : index
    %75 = vector.load %arg3[%74, %c0_27, %c0_28] : memref<8x2x32xf32, #tpu.memory_space<vmem>>, vector<1x2x32xf32>
    tpu.vector_store %arg3[%74, %c0_27, %c0_28], %73 {strides = array<i32>} : memref<8x2x32xf32, #tpu.memory_space<vmem>>, vector<1x2x32xf32>,
    %c5_i32 = arith.constant 5 : i32
    %76 = arith.addi %0, %c5_i32 : i32
    %c0_i32_29 = arith.constant 0 : i32
    %77 = arith.addi %c0_i32_29, %76 : i32
    %78 = arith.index_cast %77 : i32 to index
    %79 = memref.load %arg1[%78] : memref<16xi32, #tpu.memory_space<smem>>
    %80 = arith.index_cast %79 : i32 to index
    %c0_30 = arith.constant 0 : index
    %81 = vector.load %arg2[%80, %c0_30] : memref<64x32xf32, #tpu.memory_space<vmem>>, vector<1x32xf32>
    %c8_i32_31 = arith.constant 8 : i32
    %82 = arith.addi %c8_i32_31, %76 : i32
    %83 = arith.index_cast %82 : i32 to index
    %84 = memref.load %arg1[%83] : memref<16xi32, #tpu.memory_space<smem>>
    %85 = arith.index_cast %84 : i32 to index
    %c0_32 = arith.constant 0 : index
    %86 = vector.load %arg2[%85, %c0_32] : memref<64x32xf32, #tpu.memory_space<vmem>>, vector<1x32xf32>
    %87 = tpu.concatenate %81, %86 in 0 : vector<1x32xf32>, vector<1x32xf32> -> vector<2x32xf32>
    %88 = vector.shape_cast %87 : vector<2x32xf32> to vector<1x2x32xf32>
    %89 = arith.index_cast %c5_i32 : i32 to index
    %c0_33 = arith.constant 0 : index
    %c0_34 = arith.constant 0 : index
    %90 = vector.load %arg3[%89, %c0_33, %c0_34] : memref<8x2x32xf32, #tpu.memory_space<vmem>>, vector<1x2x32xf32>
    tpu.vector_store %arg3[%89, %c0_33, %c0_34], %88 {strides = array<i32>} : memref<8x2x32xf32, #tpu.memory_space<vmem>>, vector<1x2x32xf32>,
    %c6_i32 = arith.constant 6 : i32
    %91 = arith.addi %0, %c6_i32 : i32
    %c0_i32_35 = arith.constant 0 : i32
    %92 = arith.addi %c0_i32_35, %91 : i32
    %93 = arith.index_cast %92 : i32 to index
    %94 = memref.load %arg1[%93] : memref<16xi32, #tpu.memory_space<smem>>
    %95 = arith.index_cast %94 : i32 to index
    %c0_36 = arith.constant 0 : index
    %96 = vector.load %arg2[%95, %c0_36] : memref<64x32xf32, #tpu.memory_space<vmem>>, vector<1x32xf32>
    %c8_i32_37 = arith.constant 8 : i32
    %97 = arith.addi %c8_i32_37, %91 : i32
    %98 = arith.index_cast %97 : i32 to index
    %99 = memref.load %arg1[%98] : memref<16xi32, #tpu.memory_space<smem>>
    %100 = arith.index_cast %99 : i32 to index
    %c0_38 = arith.constant 0 : index
    %101 = vector.load %arg2[%100, %c0_38] : memref<64x32xf32, #tpu.memory_space<vmem>>, vector<1x32xf32>
    %102 = tpu.concatenate %96, %101 in 0 : vector<1x32xf32>, vector<1x32xf32> -> vector<2x32xf32>
    %103 = vector.shape_cast %102 : vector<2x32xf32> to vector<1x2x32xf32>
    %104 = arith.index_cast %c6_i32 : i32 to index
    %c0_39 = arith.constant 0 : index
    %c0_40 = arith.constant 0 : index
    %105 = vector.load %arg3[%104, %c0_39, %c0_40] : memref<8x2x32xf32, #tpu.memory_space<vmem>>, vector<1x2x32xf32>
    tpu.vector_store %arg3[%104, %c0_39, %c0_40], %103 {strides = array<i32>} : memref<8x2x32xf32, #tpu.memory_space<vmem>>, vector<1x2x32xf32>,
    %c7_i32 = arith.constant 7 : i32
    %106 = arith.addi %0, %c7_i32 : i32
    %c0_i32_41 = arith.constant 0 : i32
    %107 = arith.addi %c0_i32_41, %106 : i32
    %108 = arith.index_cast %107 : i32 to index
    %109 = memref.load %arg1[%108] : memref<16xi32, #tpu.memory_space<smem>>
    %110 = arith.index_cast %109 : i32 to index
    %c0_42 = arith.constant 0 : index
    %111 = vector.load %arg2[%110, %c0_42] : memref<64x32xf32, #tpu.memory_space<vmem>>, vector<1x32xf32>
    %c8_i32_43 = arith.constant 8 : i32
    %112 = arith.addi %c8_i32_43, %106 : i32
    %113 = arith.index_cast %112 : i32 to index
    %114 = memref.load %arg1[%113] : memref<16xi32, #tpu.memory_space<smem>>
    %115 = arith.index_cast %114 : i32 to index
    %c0_44 = arith.constant 0 : index
    %116 = vector.load %arg2[%115, %c0_44] : memref<64x32xf32, #tpu.memory_space<vmem>>, vector<1x32xf32>
    %117 = tpu.concatenate %111, %116 in 0 : vector<1x32xf32>, vector<1x32xf32> -> vector<2x32xf32>
    %118 = vector.shape_cast %117 : vector<2x32xf32> to vector<1x2x32xf32>
    %119 = arith.index_cast %c7_i32 : i32 to index
    %c0_45 = arith.constant 0 : index
    %c0_46 = arith.constant 0 : index
    %120 = vector.load %arg3[%119, %c0_45, %c0_46] : memref<8x2x32xf32, #tpu.memory_space<vmem>>, vector<1x2x32xf32>
    tpu.vector_store %arg3[%119, %c0_45, %c0_46], %118 {strides = array<i32>} : memref<8x2x32xf32, #tpu.memory_space<vmem>>, vector<1x2x32xf32>,
    %c8_i32_47 = arith.constant 8 : i32
    return
  }
  func.func @transform_0(%arg0: i32, %arg1: memref<16xi32, #tpu.memory_space<smem>>) -> (i32, i32) {
    %c0_i32 = arith.constant 0 : i32
    %c0_i32_0 = arith.constant 0 : i32
    %c0_i32_1 = arith.constant 0 : i32
    return %c0_i32, %c0_i32_0 : i32, i32
  }
  func.func @transform_1(%arg0: i32, %arg1: memref<16xi32, #tpu.memory_space<smem>>) -> (i32, i32, i32) {
    %c0_i32 = arith.constant 0 : i32
    %c0_i32_0 = arith.constant 0 : i32
    %c0_i32_1 = arith.constant 0 : i32
    return %arg0, %c0_i32, %c0_i32_0 : i32, i32, i32
  }
}

</mosaic_0001>

<llo_original>
// kernel: tpu_custom_call.1
$region0: #{tpu_custom_call.1}
  #allocation0 [shape = 'u32[]', space=smem, size = 0x4, offset = 0x4, fixed_abs, tag = 'smem constant byte address 0x4 - core index']
  #allocation1 [shape = 'u32[144,128]{1,0:T(1,128)}', space=vmem, size = 0x12000, scoped, tag = 'internal scratch']
  #allocation2 [shape = 's32[1]{0}', space=sflag, size = 0x4, scoped, tag = 'scoped memory for tpu_custom_call.1']
  #allocation3 [shape = 'u8[512]{0}', space=smem, size = 0x200, scoped, tag = 'prefetched SMEM operand 0']
  %s0 = inlined_call_operand.vmem [shape: s32[16], index: 0, kind: input, shape index: {}]
  %s1 = inlined_call_operand.vmem [shape: f32[64,32], index: 1, kind: input, shape index: {}]
  %s2 = inlined_call_operand.hbm [shape: f32[8,2,32], index: 2, kind: output, shape index: {}]
  %s3 = sld [smem:[#allocation0]]
  $region14: #{tpu_custom_call.1} parent=0
    _
  %s5 = ssub.s32 1, %s3
  %s6 = scalar_select 0, %s5, %s3
  %s7 = sshll.u32 %s0, 4
  %s8 = int_to_ptr.vmem [resolvable:$true] %s7
  %10 = dma.vmem_to_smem %s8, 16, [#allocation3], [#allocation2]
  %11 = dma.done [#allocation2], 16
  %12 = sfence
  $region1: #{tpu_custom_call.1} parent=0
    #allocation4 [shape = 'u8[8192]{0}', space=vmem, size = 0x2000, scoped, tag = 'output window, operand 0, single buffered']
    #allocation5 [shape = 's32[1]{0}', space=sflag, size = 0x4, scoped, tag = 'scoped memory for tpu_custom_call.1']
    %13 = vsyncpa [#allocation5], 0
    // Predicated region
    $region2: #{tpu_custom_call.1} parent=1 // pred_check
      _
    $region3: #{tpu_custom_call.1} parent=1 // pred_check_branch
      %15 = sbr.rel (0) target = $region5
    $region4: #{tpu_custom_call.1} parent=1 // pred_region
      _
    $region5: #{tpu_custom_call.1} parent=1 // pred_fallthru
      _
    %s16 = smul.u32 0, 8
    %s17 = sld [smem:[#allocation3 + %s16]]
    %s18 = scalar_lea.vmem %s1, %s17
    %v19 = vld [vmem:[%s18] sm:$0x1]
    %s20 = sadd.s32 %s16, 8
    %s21 = sld [smem:[#allocation3 + %s20]]
    %s22 = scalar_lea.vmem %s1, %s21
    %v23 = vld [vmem:[%s22] sm:$0x1]
    %v25 = vrot.slane %v23, 7
    %vm27 = vcmask 1040384
    %v28 = vsel %vm27, %v19, %v25
    %vm29 = vcmask 254976
    %30 = vst.msk [vmem:[#allocation4] sm:$0x3] %vm29, %v28
    %s31 = sadd.s32 %s16, 1
    %s32 = sld [smem:[#allocation3 + %s31]]
    %s33 = scalar_lea.vmem %s1, %s32
    %v34 = vld [vmem:[%s33] sm:$0x1]
    %s35 = sadd.s32 %s16, 9
    %s36 = sld [smem:[#allocation3 + %s35]]
    %s37 = scalar_lea.vmem %s1, %s36
    %v38 = vld [vmem:[%s37] sm:$0x1]
    %v40 = vrot.slane %v38, 7
    %v42 = vsel %vm27, %v34, %v40
    %s43 = scalar_lea.vmem [#allocation4], 2
    %44 = vst.msk [vmem:[%s43] sm:$0x3] %vm29, %v42
    %s45 = sadd.s32 %s16, 2
    %s46 = sld [smem:[#allocation3 + %s45]]
    %s47 = scalar_lea.vmem %s1, %s46
    %v48 = vld [vmem:[%s47] sm:$0x1]
    %s49 = sadd.s32 %s16, 10
    %s50 = sld [smem:[#allocation3 + %s49]]
    %s51 = scalar_lea.vmem %s1, %s50
    %v52 = vld [vmem:[%s51] sm:$0x1]
    %v54 = vrot.slane %v52, 7
    %v56 = vsel %vm27, %v48, %v54
    %s57 = scalar_lea.vmem [#allocation4], 4
    %58 = vst.msk [vmem:[%s57] sm:$0x3] %vm29, %v56
    %s59 = sadd.s32 %s16, 3
    %s60 = sld [smem:[#allocation3 + %s59]]
    %s61 = scalar_lea.vmem %s1, %s60
    %v62 = vld [vmem:[%s61] sm:$0x1]
    %s63 = sadd.s32 %s16, 11
    %s64 = sld [smem:[#allocation3 + %s63]]
    %s65 = scalar_lea.vmem %s1, %s64
    %v66 = vld [vmem:[%s65] sm:$0x1]
    %v68 = vrot.slane %v66, 7
    %v70 = vsel %vm27, %v62, %v68
    %s71 = scalar_lea.vmem [#allocation4], 6
    %72 = vst.msk [vmem:[%s71] sm:$0x3] %vm29, %v70
    %s73 = sadd.s32 %s16, 4
    %s74 = sld [smem:[#allocation3 + %s73]]
    %s75 = scalar_lea.vmem %s1, %s74
    %v76 = vld [vmem:[%s75] sm:$0x1]
    %s77 = sadd.s32 %s16, 12
    %s78 = sld [smem:[#allocation3 + %s77]]
    %s79 = scalar_lea.vmem %s1, %s78
    %v80 = vld [vmem:[%s79] sm:$0x1]
    %v82 = vrot.slane %v80, 7
    %v84 = vsel %vm27, %v76, %v82
    %s85 = scalar_lea.vmem [#allocation4], 8
    %86 = vst.msk [vmem:[%s85] sm:$0x3] %vm29, %v84
    %s87 = sadd.s32 %s16, 5
    %s88 = sld [smem:[#allocation3 + %s87]]
    %s89 = scalar_lea.vmem %s1, %s88
    %v90 = vld [vmem:[%s89] sm:$0x1]
    %s91 = sadd.s32 %s16, 13
    %s92 = sld [smem:[#allocation3 + %s91]]
    %s93 = scalar_lea.vmem %s1, %s92
    %v94 = vld [vmem:[%s93] sm:$0x1]
    %v96 = vrot.slane %v94, 7
    %v98 = vsel %vm27, %v90, %v96
    %s99 = scalar_lea.vmem [#allocation4], 10
    %100 = vst.msk [vmem:[%s99] sm:$0x3] %vm29, %v98
    %s101 = sadd.s32 %s16, 6
    %s102 = sld [smem:[#allocation3 + %s101]]
    %s103 = scalar_lea.vmem %s1, %s102
    %v104 = vld [vmem:[%s103] sm:$0x1]
    %s105 = sadd.s32 %s16, 14
    %s106 = sld [smem:[#allocation3 + %s105]]
    %s107 = scalar_lea.vmem %s1, %s106
    %v108 = vld [vmem:[%s107] sm:$0x1]
    %v110 = vrot.slane %v108, 7
    %v112 = vsel %vm27, %v104, %v110
    %s113 = scalar_lea.vmem [#allocation4], 12
    %114 = vst.msk [vmem:[%s113] sm:$0x3] %vm29, %v112
    %s115 = sadd.s32 %s16, 7
    %s116 = sld [smem:[#allocation3 + %s115]]
    %s117 = scalar_lea.vmem %s1, %s116
    %v118 = vld [vmem:[%s117] sm:$0x1]
    %s119 = sadd.s32 %s16, 15
    %s120 = sld [smem:[#allocation3 + %s119]]
    %s121 = scalar_lea.vmem %s1, %s120
    %v122 = vld [vmem:[%s121] sm:$0x1]
    %v124 = vrot.slane %v122, 7
    %v126 = vsel %vm27, %v118, %v124
    %s127 = scalar_lea.vmem [#allocation4], 14
    %128 = vst.msk [vmem:[%s127] sm:$0x3] %vm29, %v126
    // Predicated region
    $region6: #{tpu_custom_call.1} parent=1 // pred_check
      _
    $region7: #{tpu_custom_call.1} parent=1 // pred_check_branch
      %130 = sbr.rel (0) target = $region9
    $region8: #{tpu_custom_call.1} parent=1 // pred_region
      %s132 = ssub.s32 256, 256
      %133 = vsyncadd [#allocation5], %s132
      %s134 = sshll.u32 [#allocation4], 4
      %s135 = int_to_ptr.vmem [resolvable:$true] %s134
      %140 = dma.vmem_to_hbm [thread:$0]  %s135, 256, %s2, [#allocation5], 32, 32, 2
    $region9: #{tpu_custom_call.1} parent=1 // pred_fallthru
      _
    // Predicated region
    $region10: #{tpu_custom_call.1} parent=1 // pred_check
      _
    $region11: #{tpu_custom_call.1} parent=1 // pred_check_branch
      %142 = sbr.rel (0) target = $region13
    $region12: #{tpu_custom_call.1} parent=1 // pred_region
      %143 = dma.done [#allocation5], 256
    $region13: #{tpu_custom_call.1} parent=1 // pred_fallthru
      _
    %144 = vsyncpa [#allocation5], 1

// kernel: tpu_custom_call.1
$region0: #{tpu_custom_call.1}
  #allocation0 [shape = 'u32[]', space=smem, size = 0x4, offset = 0x4, fixed_abs, tag = 'smem constant byte address 0x4 - core index']
  #allocation1 [shape = 'u32[144,128]{1,0:T(1,128)}', space=vmem, size = 0x12000, scoped, tag = 'internal scratch']
  #allocation2 [shape = 's32[1]{0}', space=sflag, size = 0x4, scoped, tag = 'scoped memory for tpu_custom_call.1']
  #allocation3 [shape = 'u8[512]{0}', space=smem, size = 0x200, scoped, tag = 'prefetched SMEM operand 0']
  %s0 = inlined_call_operand.vmem [shape: s32[16], index: 0, kind: input, shape index: {}]
  %s1 = inlined_call_operand.vmem [shape: f32[64,32], index: 1, kind: input, shape index: {}]
  %s2 = inlined_call_operand.hbm [shape: f32[8,2,32], index: 2, kind: output, shape index: {}]
  %s3 = sld [smem:[#allocation0]]
  $region14: #{tpu_custom_call.1} parent=0
    _
  %s5 = ssub.s32 1, %s3
  %s6 = scalar_select 0, %s5, %s3
  %s7 = sshll.u32 %s0, 4
  %s8 = int_to_ptr.vmem [resolvable:$true] %s7
  %10 = dma.vmem_to_smem %s8, 16, [#allocation3], [#allocation2]
  %11 = dma.done [#allocation2], 16
  %12 = sfence
  $region1: #{tpu_custom_call.1} parent=0
    #allocation4 [shape = 'u8[8192]{0}', space=vmem, size = 0x2000, scoped, tag = 'output window, operand 0, single buffered']
    #allocation5 [shape = 's32[1]{0}', space=sflag, size = 0x4, scoped, tag = 'scoped memory for tpu_custom_call.1']
    %13 = vsyncpa [#allocation5], 0
    // Predicated region
    $region2: #{tpu_custom_call.1} parent=1 // pred_check
      _
    $region3: #{tpu_custom_call.1} parent=1 // pred_check_branch
      %15 = sbr.rel (0) target = $region5
    $region4: #{tpu_custom_call.1} parent=1 // pred_region
      _
    $region5: #{tpu_custom_call.1} parent=1 // pred_fallthru
      _
    %s16 = smul.u32 0, 8
    %s17 = sld [smem:[#allocation3 + %s16]]
    %s18 = scalar_lea.vmem %s1, %s17
    %v19 = vld [vmem:[%s18] sm:$0x1]
    %s20 = sadd.s32 %s16, 8
    %s21 = sld [smem:[#allocation3 + %s20]]
    %s22 = scalar_lea.vmem %s1, %s21
    %v23 = vld [vmem:[%s22] sm:$0x1]
    %v25 = vrot.slane %v23, 7
    %vm27 = vcmask 1040384
    %v28 = vsel %vm27, %v19, %v25
    %vm29 = vcmask 254976
    %30 = vst.msk [vmem:[#allocation4] sm:$0x3] %vm29, %v28
    %s31 = sadd.s32 %s16, 1
    %s32 = sld [smem:[#allocation3 + %s31]]
    %s33 = scalar_lea.vmem %s1, %s32
    %v34 = vld [vmem:[%s33] sm:$0x1]
    %s35 = sadd.s32 %s16, 9
    %s36 = sld [smem:[#allocation3 + %s35]]
    %s37 = scalar_lea.vmem %s1, %s36
    %v38 = vld [vmem:[%s37] sm:$0x1]
    %v40 = vrot.slane %v38, 7
    %v42 = vsel %vm27, %v34, %v40
    %s43 = scalar_lea.vmem [#allocation4], 2
    %44 = vst.msk [vmem:[%s43] sm:$0x3] %vm29, %v42
    %s45 = sadd.s32 %s16, 2
    %s46 = sld [smem:[#allocation3 + %s45]]
    %s47 = scalar_lea.vmem %s1, %s46
    %v48 = vld [vmem:[%s47] sm:$0x1]
    %s49 = sadd.s32 %s16, 10
    %s50 = sld [smem:[#allocation3 + %s49]]
    %s51 = scalar_lea.vmem %s1, %s50
    %v52 = vld [vmem:[%s51] sm:$0x1]
    %v54 = vrot.slane %v52, 7
    %v56 = vsel %vm27, %v48, %v54
    %s57 = scalar_lea.vmem [#allocation4], 4
    %58 = vst.msk [vmem:[%s57] sm:$0x3] %vm29, %v56
    %s59 = sadd.s32 %s16, 3
    %s60 = sld [smem:[#allocation3 + %s59]]
    %s61 = scalar_lea.vmem %s1, %s60
    %v62 = vld [vmem:[%s61] sm:$0x1]
    %s63 = sadd.s32 %s16, 11
    %s64 = sld [smem:[#allocation3 + %s63]]
    %s65 = scalar_lea.vmem %s1, %s64
    %v66 = vld [vmem:[%s65] sm:$0x1]
    %v68 = vrot.slane %v66, 7
    %v70 = vsel %vm27, %v62, %v68
    %s71 = scalar_lea.vmem [#allocation4], 6
    %72 = vst.msk [vmem:[%s71] sm:$0x3] %vm29, %v70
    %s73 = sadd.s32 %s16, 4
    %s74 = sld [smem:[#allocation3 + %s73]]
    %s75 = scalar_lea.vmem %s1, %s74
    %v76 = vld [vmem:[%s75] sm:$0x1]
    %s77 = sadd.s32 %s16, 12
    %s78 = sld [smem:[#allocation3 + %s77]]
    %s79 = scalar_lea.vmem %s1, %s78
    %v80 = vld [vmem:[%s79] sm:$0x1]
    %v82 = vrot.slane %v80, 7
    %v84 = vsel %vm27, %v76, %v82
    %s85 = scalar_lea.vmem [#allocation4], 8
    %86 = vst.msk [vmem:[%s85] sm:$0x3] %vm29, %v84
    %s87 = sadd.s32 %s16, 5
    %s88 = sld [smem:[#allocation3 + %s87]]
    %s89 = scalar_lea.vmem %s1, %s88
    %v90 = vld [vmem:[%s89] sm:$0x1]
    %s91 = sadd.s32 %s16, 13
    %s92 = sld [smem:[#allocation3 + %s91]]
    %s93 = scalar_lea.vmem %s1, %s92
    %v94 = vld [vmem:[%s93] sm:$0x1]
    %v96 = vrot.slane %v94, 7
    %v98 = vsel %vm27, %v90, %v96
    %s99 = scalar_lea.vmem [#allocation4], 10
    %100 = vst.msk [vmem:[%s99] sm:$0x3] %vm29, %v98
    %s101 = sadd.s32 %s16, 6
    %s102 = sld [smem:[#allocation3 + %s101]]
    %s103 = scalar_lea.vmem %s1, %s102
    %v104 = vld [vmem:[%s103] sm:$0x1]
    %s105 = sadd.s32 %s16, 14
    %s106 = sld [smem:[#allocation3 + %s105]]
    %s107 = scalar_lea.vmem %s1, %s106
    %v108 = vld [vmem:[%s107] sm:$0x1]
    %v110 = vrot.slane %v108, 7
    %v112 = vsel %vm27, %v104, %v110
    %s113 = scalar_lea.vmem [#allocation4], 12
    %114 = vst.msk [vmem:[%s113] sm:$0x3] %vm29, %v112
    %s115 = sadd.s32 %s16, 7
    %s116 = sld [smem:[#allocation3 + %s115]]
    %s117 = scalar_lea.vmem %s1, %s116
    %v118 = vld [vmem:[%s117] sm:$0x1]
    %s119 = sadd.s32 %s16, 15
    %s120 = sld [smem:[#allocation3 + %s119]]
    %s121 = scalar_lea.vmem %s1, %s120
    %v122 = vld [vmem:[%s121] sm:$0x1]
    %v124 = vrot.slane %v122, 7
    %v126 = vsel %vm27, %v118, %v124
    %s127 = scalar_lea.vmem [#allocation4], 14
    %128 = vst.msk [vmem:[%s127] sm:$0x3] %vm29, %v126
    // Predicated region
    $region6: #{tpu_custom_call.1} parent=1 // pred_check
      _
    $region7: #{tpu_custom_call.1} parent=1 // pred_check_branch
      %130 = sbr.rel (0) target = $region9
    $region8: #{tpu_custom_call.1} parent=1 // pred_region
      %s132 = ssub.s32 256, 256
      %133 = vsyncadd [#allocation5], %s132
      %s134 = sshll.u32 [#allocation4], 4
      %s135 = int_to_ptr.vmem [resolvable:$true] %s134
      %140 = dma.vmem_to_hbm [thread:$0]  %s135, 256, %s2, [#allocation5], 32, 32, 2
    $region9: #{tpu_custom_call.1} parent=1 // pred_fallthru
      _
    // Predicated region
    $region10: #{tpu_custom_call.1} parent=1 // pred_check
      _
    $region11: #{tpu_custom_call.1} parent=1 // pred_check_branch
      %142 = sbr.rel (0) target = $region13
    $region12: #{tpu_custom_call.1} parent=1 // pred_region
      %143 = dma.done [#allocation5], 256
    $region13: #{tpu_custom_call.1} parent=1 // pred_fallthru
      _
    %144 = vsyncpa [#allocation5], 1

</llo_original>
